<compile_context>
chip_gen: v6e
topology: v6e:2x2x1
jax: 0.10.0
libtpu: 0.0.40
codegen_flags: <defaults>
</compile_context>

<pallas_src>
import functools

import jax
import jax.numpy as jnp
from jax.experimental import pallas as pl
from jax.experimental.pallas import tpu as pltpu

IN_FEATURES = 32
OUT_FEATURES = 8
GROUP = 16  # rows packed per output vreg: 16 * 8 = 128 lanes


def _num_tensorcores() -> int:
    """Best-effort detection of TensorCores per chip (v7x has 2)."""
    try:
        kind = jax.devices()[0].device_kind.lower()
        if "v7" in kind or "7x" in kind:
            return 2
    except Exception:
        pass
    return 1


def _packed_kernel(x_ref, w_ref, b_ref, o_ref):
    # s = xp @ W_bd + b, where W_bd = block-diag of 2*W^T, b = tiled 2*bias.
    s = jnp.dot(x_ref[...], w_ref[...], preferred_element_type=jnp.float32)
    s = s + b_ref[...]
    # Collapsed epilogue (exact for finite inputs):
    #   v1 = s/2 ; v2 = max(v1,0.5)*2-1 >= 0 ; v3 = max(sign(v2),0)
    #   v4 = v2*v3 + v3  ==  s if s > 1 else 0
    o_ref[...] = jnp.where(s > 1.0, s, 0.0).astype(o_ref.dtype)


def prepare_params(weight, bias, group=GROUP):
    """One-time layout prep: fold the 2x scale and build lane-packed params."""
    w2 = 2.0 * jnp.asarray(weight, jnp.float32).T                # (IN, OUT)
    in_f, out_f = w2.shape
    eye = jnp.eye(group, dtype=jnp.float32)
    # Block-diagonal (group*IN, group*OUT): block (g,g) == 2*W^T.
    w_bd = jnp.einsum("gh,io->giho", eye, w2).reshape(group * in_f,
                                                      group * out_f)
    b2 = 2.0 * jnp.asarray(bias, jnp.float32).reshape(1, out_f)
    b_tiled = jnp.tile(b2, (1, group))                           # (1, group*OUT)
    return w_bd, b_tiled


@functools.partial(jax.jit, static_argnames=("group", "tm"))
def linear_gate(x, w_bd, b_tiled, *, group=GROUP, tm=2048):
    """x: (B, IN) f32 -> (B, OUT) f32 using the lane-packed Pallas kernel."""
    b_rows, in_f = x.shape
    k, n = w_bd.shape                       # (group*IN, group*OUT) = (512, 128)
    out_f = n // group

    # Lane packing: pad rows to a multiple of `group`, fold 16 rows into lanes.
    bp = -(-b_rows // group)
    pad = bp * group - b_rows
    xp = jnp.pad(x, ((0, pad), (0, 0))) if pad else x
    xp = xp.reshape(bp, group * in_f)       # free row-major reshape -> (Bp, 512)

    # Block-size selection (generation-aware, in packed rows):
    #  * single-TC (v5e/v6e): one big block -> a single grid step.
    #  * dual-TC (v7x): guarantee >= 2 grid steps so "parallel" shards rows.
    n_tc = _num_tensorcores()
    if bp <= 8 or n_tc < 2:
        blk = bp if bp <= tm else (tm // 8) * 8
    else:
        half = -(-bp // 2)
        blk = min(((half + 7) // 8) * 8, tm)
        if blk >= bp:
            blk = bp
    grid = (pl.cdiv(bp, blk),)

    out_p = pl.pallas_call(
        _packed_kernel,
        out_shape=jax.ShapeDtypeStruct((bp, n), jnp.float32),
        grid=grid,
        in_specs=[
            pl.BlockSpec((blk, k), lambda i: (i, 0)),
            pl.BlockSpec((k, n), lambda i: (0, 0)),
            pl.BlockSpec((1, n), lambda i: (0, 0)),
        ],
        out_specs=pl.BlockSpec((blk, n), lambda i: (i, 0)),
        compiler_params=pltpu.CompilerParams(
            dimension_semantics=("parallel",)),
    )(xp, w_bd, b_tiled)

    # Unpack lanes back to (B, OUT): free reshape + slice off row padding.
    return out_p.reshape(bp * group, out_f)[:b_rows]


def _reference(x, weight, bias):
    """Plain-JAX transcription of the ORIGINAL op chain (un-simplified)."""
    v1 = x @ weight.T + bias
    v2 = jnp.maximum(v1, 0.5) * 2.0 - 1.0
    v3 = jnp.maximum(jnp.sign(v2), 0.0)
    return v2 * v3 + v3


if __name__ == "__main__":
    key = jax.random.PRNGKey(0)
    kx, kw, kb, kx2 = jax.random.split(key, 4)

    # Params mimicking torch.nn.Linear default init: U(-1/sqrt(IN), 1/sqrt(IN))
    bound = 1.0 / (IN_FEATURES ** 0.5)
    weight = jax.random.uniform(kw, (OUT_FEATURES, IN_FEATURES),
                                minval=-bound, maxval=bound, dtype=jnp.float32)
    bias = jax.random.uniform(kb, (OUT_FEATURES,),
                              minval=-bound, maxval=bound, dtype=jnp.float32)

    # One-time parameter prep (fold 2x scale, build block-diagonal weight).
    w_bd, b_tiled = prepare_params(weight, bias)

    # Primary test: module's own shape, x1 = torch.randn(1, 32)
    x1 = jax.random.normal(kx, (1, IN_FEATURES), dtype=jnp.float32)
    out = jax.block_until_ready(linear_gate(x1, w_bd, b_tiled))
    ref = _reference(x1, weight, bias)
    assert out.shape == (1, OUT_FEATURES)
    assert jnp.allclose(out, ref, atol=1e-5), "mismatch vs reference (B=1)"

    # Secondary test: batched path with B not a multiple of 16 / block size,
    # exercising row padding, lane packing and the partial last block.
    xb = jax.random.normal(kx2, (1000, IN_FEATURES), dtype=jnp.float32)
    out_b = jax.block_until_ready(linear_gate(xb, w_bd, b_tiled))
    ref_b = _reference(xb, weight, bias)
    assert out_b.shape == (1000, OUT_FEATURES)
    assert jnp.allclose(out_b, ref_b, atol=1e-5), "mismatch vs reference (B=1000)"

    print("KERNEL_OK")
</pallas_src>

<mosaic_0001>
module attributes {stable_mosaic.version = 11 : i64} {
  func.func @_packed_kernel(%arg0: i32, %arg1: memref<1x512xf32, #tpu.memory_space<vmem>>, %arg2: memref<512x128xf32, #tpu.memory_space<vmem>>, %arg3: memref<1x128xf32, #tpu.memory_space<vmem>>, %arg4: memref<1x128xf32, #tpu.memory_space<vmem>>) attributes {dimension_semantics = [#tpu.dimension_semantics<parallel>], iteration_bounds = array<i64: 1>, scalar_prefetch = 0 : i64, scratch_operands = 0 : i64, tpu.core_type = #tpu.core_type<tc>, window_params = [{transform_indices = @transform_0, window_bounds = array<i64: 1, 512>}, {pipeline_mode = #tpu.pipeline_mode<synchronous>, transform_indices = @transform_1, window_bounds = array<i64: 512, 128>}, {pipeline_mode = #tpu.pipeline_mode<synchronous>, transform_indices = @transform_2, window_bounds = array<i64: 1, 128>}, {transform_indices = @transform_3, window_bounds = array<i64: 1, 128>}]} {
    %c0 = arith.constant 0 : index
    %c0_0 = arith.constant 0 : index
    %0 = vector.load %arg1[%c0, %c0_0] : memref<1x512xf32, #tpu.memory_space<vmem>>, vector<1x512xf32>
    %c0_1 = arith.constant 0 : index
    %c0_2 = arith.constant 0 : index
    %1 = vector.load %arg2[%c0_1, %c0_2] : memref<512x128xf32, #tpu.memory_space<vmem>>, vector<512x128xf32>
    %cst = arith.constant dense<0.000000e+00> : vector<1x128xf32>
    %2 = tpu.matmul %0, %1, %cst {dimension_numbers = #tpu.dot_dimension_numbers<[1], [0], [0], [1], [0, 0, 1, 1], [], []>} : vector<1x512xf32>, vector<512x128xf32>, vector<1x128xf32> -> vector<1x128xf32>
    %c0_3 = arith.constant 0 : index
    %c0_4 = arith.constant 0 : index
    %3 = vector.load %arg3[%c0_3, %c0_4] : memref<1x128xf32, #tpu.memory_space<vmem>>, vector<1x128xf32>
    %4 = arith.addf %2, %3 : vector<1x128xf32>
    %cst_5 = arith.constant 1.000000e+00 : f32
    %5 = vector.broadcast %cst_5 : f32 to vector<1x128xf32>
    %6 = arith.cmpf ogt, %4, %5 : vector<1x128xf32>
    %cst_6 = arith.constant 0.000000e+00 : f32
    %7 = vector.broadcast %cst_6 : f32 to vector<1x128xf32>
    %8 = arith.select %6, %4, %7 : vector<1x128xi1>, vector<1x128xf32>
    %c0_7 = arith.constant 0 : index
    %c0_8 = arith.constant 0 : index
    %9 = vector.load %arg4[%c0_7, %c0_8] : memref<1x128xf32, #tpu.memory_space<vmem>>, vector<1x128xf32>
    tpu.vector_store %arg4[%c0_7, %c0_8], %8 {strides = array<i32>} : memref<1x128xf32, #tpu.memory_space<vmem>>, vector<1x128xf32>,
    return
  }
  func.func @transform_0(%arg0: i32) -> (i32, i32) {
    %c0_i32 = arith.constant 0 : i32
    %c0_i32_0 = arith.constant 0 : i32
    return %arg0, %c0_i32 : i32, i32
  }
  func.func @transform_1(%arg0: i32) -> (i32, i32) {
    %c0_i32 = arith.constant 0 : i32
    %c0_i32_0 = arith.constant 0 : i32
    %c0_i32_1 = arith.constant 0 : i32
    return %c0_i32, %c0_i32_0 : i32, i32
  }
  func.func @transform_2(%arg0: i32) -> (i32, i32) {
    %c0_i32 = arith.constant 0 : i32
    %c0_i32_0 = arith.constant 0 : i32
    %c0_i32_1 = arith.constant 0 : i32
    return %c0_i32, %c0_i32_0 : i32, i32
  }
  func.func @transform_3(%arg0: i32) -> (i32, i32) {
    %c0_i32 = arith.constant 0 : i32
    %c0_i32_0 = arith.constant 0 : i32
    return %arg0, %c0_i32 : i32, i32
  }
}

</mosaic_0001>

<llo_original>
// kernel: linear_gate.1
$region0: #{linear_gate.1}
  #allocation0 [shape = 'u32[]', space=smem, size = 0x4, offset = 0x4, fixed_abs, tag = 'smem constant byte address 0x4 - core index']
  #allocation1 [shape = 'u32[144,128]{1,0:T(1,128)}', space=vmem, size = 0x12000, scoped, tag = 'internal scratch']
  %s0 = inlined_call_operand.vmem [shape: f32[1,512], index: 0, kind: input, shape index: {}]
  %s1 = inlined_call_operand.hbm [shape: f32[512,128], index: 1, kind: input, shape index: {}]
  %s2 = inlined_call_operand.vmem [shape: f32[1,128], index: 2, kind: input, shape index: {}]
  %s3 = inlined_call_operand.hbm [shape: f32[1,128], index: 3, kind: output, shape index: {}]
  %s4 = sld [smem:[#allocation0]]
  $region26: #{linear_gate.1} parent=0
    _
  %s6 = ssub.s32 1, %s4
  %s7 = scalar_select 0, %s6, %s4
  $region1: #{linear_gate.1} parent=0
    #allocation2 [shape = 'u8[262144]{0}', space=vmem, size = 0x40000, scoped, tag = 'input window, operand 1, single buffered']
    #allocation3 [shape = 's32[1]{0}', space=sflag, size = 0x4, scoped, tag = 'scoped memory for linear_gate.1']
    #allocation4 [shape = 's32[1]{0}', space=sflag, size = 0x4, scoped, tag = 'scoped memory for linear_gate.1']
    #allocation5 [shape = 'u8[512]{0}', space=vmem, size = 0x400, scoped, tag = 'output window, operand 0, single buffered']
    %8 = vsyncpa [#allocation3], 0
    %9 = vsyncpa [#allocation4], 0
    // Predicated region
    $region2: #{linear_gate.1} parent=1 // pred_check
      _
    $region3: #{linear_gate.1} parent=1 // pred_check_branch
      %11 = sbr.rel (0) target = $region5
    $region4: #{linear_gate.1} parent=1 // pred_region
      _
    $region5: #{linear_gate.1} parent=1 // pred_fallthru
      _
    // Predicated region
    $region6: #{linear_gate.1} parent=1 // pred_check
      _
    $region7: #{linear_gate.1} parent=1 // pred_check_branch
      %13 = sbr.rel (0) target = $region9
    $region8: #{linear_gate.1} parent=1 // pred_region
      %s15 = ssub.s32 8192, 8192
      %16 = vsyncadd [#allocation3], %s15
      %s17 = sshll.u32 [#allocation2], 4
      %s18 = int_to_ptr.vmem [resolvable:$true] %s17
      %23 = dma.hbm_to_vmem [thread:$0]  %s1, 8192, %s18, [#allocation3], 128, 128, 8
    $region9: #{linear_gate.1} parent=1 // pred_fallthru
      _
    // Predicated region
    $region10: #{linear_gate.1} parent=1 // pred_check
      _
    $region11: #{linear_gate.1} parent=1 // pred_check_branch
      %25 = sbr.rel (0) target = $region13
    $region12: #{linear_gate.1} parent=1 // pred_region
      _
    $region13: #{linear_gate.1} parent=1 // pred_fallthru
      _
    // Predicated region
    $region14: #{linear_gate.1} parent=1 // pred_check
      _
    $region15: #{linear_gate.1} parent=1 // pred_check_branch
      %27 = sbr.rel (0) target = $region17
    $region16: #{linear_gate.1} parent=1 // pred_region
      %28 = dma.done [#allocation3], 8192
    $region17: #{linear_gate.1} parent=1 // pred_fallthru
      _
    %v29 = vld [vmem:[%s0] sm:$0xf]
    %v30 = vld [vmem:[#allocation2] sm:$0xff]
    %v31 = vld [vmem:[#allocation2 + $0x8] sm:$0xff]
    %v32 = vld [vmem:[#allocation2 + $0x10] sm:$0xff]
    %v33 = vld [vmem:[#allocation2 + $0x18] sm:$0xff]
    %v34 = vld [vmem:[#allocation2 + $0x20] sm:$0xff]
    %v35 = vld [vmem:[#allocation2 + $0x28] sm:$0xff]
    %v36 = vld [vmem:[#allocation2 + $0x30] sm:$0xff]
    %v37 = vld [vmem:[#allocation2 + $0x38] sm:$0xff]
    %v38 = vld [vmem:[#allocation2 + $0x40] sm:$0xff]
    %v39 = vld [vmem:[#allocation2 + $0x48] sm:$0xff]
    %v40 = vld [vmem:[#allocation2 + $0x50] sm:$0xff]
    %v41 = vld [vmem:[#allocation2 + $0x58] sm:$0xff]
    %v42 = vld [vmem:[#allocation2 + $0x60] sm:$0xff]
    %v43 = vld [vmem:[#allocation2 + $0x68] sm:$0xff]
    %v44 = vld [vmem:[#allocation2 + $0x70] sm:$0xff]
    %v45 = vld [vmem:[#allocation2 + $0x78] sm:$0xff]
    %v46 = vld [vmem:[#allocation2 + $0x80] sm:$0xff]
    %v47 = vld [vmem:[#allocation2 + $0x88] sm:$0xff]
    %v48 = vld [vmem:[#allocation2 + $0x90] sm:$0xff]
    %v49 = vld [vmem:[#allocation2 + $0x98] sm:$0xff]
    %v50 = vld [vmem:[#allocation2 + $0xa0] sm:$0xff]
    %v51 = vld [vmem:[#allocation2 + $0xa8] sm:$0xff]
    %v52 = vld [vmem:[#allocation2 + $0xb0] sm:$0xff]
    %v53 = vld [vmem:[#allocation2 + $0xb8] sm:$0xff]
    %v54 = vld [vmem:[#allocation2 + $0xc0] sm:$0xff]
    %v55 = vld [vmem:[#allocation2 + $0xc8] sm:$0xff]
    %v56 = vld [vmem:[#allocation2 + $0xd0] sm:$0xff]
    %v57 = vld [vmem:[#allocation2 + $0xd8] sm:$0xff]
    %v58 = vld [vmem:[#allocation2 + $0xe0] sm:$0xff]
    %v59 = vld [vmem:[#allocation2 + $0xe8] sm:$0xff]
    %v60 = vld [vmem:[#allocation2 + $0xf0] sm:$0xff]
    %v61 = vld [vmem:[#allocation2 + $0xf8] sm:$0xff]
    %v62 = vld [vmem:[#allocation2 + $0x100] sm:$0xff]
    %v63 = vld [vmem:[#allocation2 + $0x108] sm:$0xff]
    %v64 = vld [vmem:[#allocation2 + $0x110] sm:$0xff]
    %v65 = vld [vmem:[#allocation2 + $0x118] sm:$0xff]
    %v66 = vld [vmem:[#allocation2 + $0x120] sm:$0xff]
    %v67 = vld [vmem:[#allocation2 + $0x128] sm:$0xff]
    %v68 = vld [vmem:[#allocation2 + $0x130] sm:$0xff]
    %v69 = vld [vmem:[#allocation2 + $0x138] sm:$0xff]
    %v70 = vld [vmem:[#allocation2 + $0x140] sm:$0xff]
    %v71 = vld [vmem:[#allocation2 + $0x148] sm:$0xff]
    %v72 = vld [vmem:[#allocation2 + $0x150] sm:$0xff]
    %v73 = vld [vmem:[#allocation2 + $0x158] sm:$0xff]
    %v74 = vld [vmem:[#allocation2 + $0x160] sm:$0xff]
    %v75 = vld [vmem:[#allocation2 + $0x168] sm:$0xff]
    %v76 = vld [vmem:[#allocation2 + $0x170] sm:$0xff]
    %v77 = vld [vmem:[#allocation2 + $0x178] sm:$0xff]
    %v78 = vld [vmem:[#allocation2 + $0x180] sm:$0xff]
    %v79 = vld [vmem:[#allocation2 + $0x188] sm:$0xff]
    %v80 = vld [vmem:[#allocation2 + $0x190] sm:$0xff]
    %v81 = vld [vmem:[#allocation2 + $0x198] sm:$0xff]
    %v82 = vld [vmem:[#allocation2 + $0x1a0] sm:$0xff]
    %v83 = vld [vmem:[#allocation2 + $0x1a8] sm:$0xff]
    %v84 = vld [vmem:[#allocation2 + $0x1b0] sm:$0xff]
    %v85 = vld [vmem:[#allocation2 + $0x1b8] sm:$0xff]
    %v86 = vld [vmem:[#allocation2 + $0x1c0] sm:$0xff]
    %v87 = vld [vmem:[#allocation2 + $0x1c8] sm:$0xff]
    %v88 = vld [vmem:[#allocation2 + $0x1d0] sm:$0xff]
    %v89 = vld [vmem:[#allocation2 + $0x1d8] sm:$0xff]
    %v90 = vld [vmem:[#allocation2 + $0x1e0] sm:$0xff]
    %v91 = vld [vmem:[#allocation2 + $0x1e8] sm:$0xff]
    %v92 = vld [vmem:[#allocation2 + $0x1f0] sm:$0xff]
    %v93 = vld [vmem:[#allocation2 + $0x1f8] sm:$0xff]
    %v94 = vld [vmem:[%s2] sm:$0x1]
    %v96 = vlaneseq
    %v97 = vshrl.u32 %v96, 7
    %v98 = vsub.s32 0, %v97
    %v99 = vrot.slane %v29, %v98
    %v100 = vlaneseq
    %v101 = vshrl.u32 %v100, 7
    %v102 = vsub.s32 1, %v101
    %v103 = vrot.slane %v29, %v102
    %v104 = vlaneseq
    %v105 = vshrl.u32 %v104, 7
    %v106 = vsub.s32 2, %v105
    %v107 = vrot.slane %v29, %v106
    %v108 = vlaneseq
    %v109 = vshrl.u32 %v108, 7
    %v110 = vsub.s32 3, %v109
    %v111 = vrot.slane %v29, %v110
    %116 = vmatprep.subr.mxu0 0.0
    %117 = vmatpush1.msra.mxu0 %v45
    %118 = vmatprep.subr.mxu0 0.0
    %119 = vmatpush1.msra.mxu0 %v44
    %120 = vmatprep.subr.mxu0 0.0
    %121 = vmatpush1.msra.mxu0 %v43
    %122 = vmatprep.subr.mxu0 0.0
    %123 = vmatpush1.msra.mxu0 %v42
    %124 = vmatprep.subr.mxu0 0.0
    %125 = vmatpush1.msra.mxu0 %v41
    %126 = vmatprep.subr.mxu0 0.0
    %127 = vmatpush1.msra.mxu0 %v40
    %128 = vmatprep.subr.mxu0 0.0
    %129 = vmatpush1.msra.mxu0 %v39
    %130 = vmatprep.subr.mxu0 0.0
    %131 = vmatpush1.msra.mxu0 %v38
    %132 = vmatprep.subr.mxu0 0.0
    %133 = vmatpush1.msra.mxu0 %v37
    %134 = vmatprep.subr.mxu0 0.0
    %135 = vmatpush1.msra.mxu0 %v36
    %136 = vmatprep.subr.mxu0 0.0
    %137 = vmatpush1.msra.mxu0 %v35
    %138 = vmatprep.subr.mxu0 0.0
    %139 = vmatpush1.msra.mxu0 %v34
    %140 = vmatprep.subr.mxu0 0.0
    %141 = vmatpush1.msra.mxu0 %v33
    %142 = vmatprep.subr.mxu0 0.0
    %143 = vmatpush1.msra.mxu0 %v32
    %144 = vmatprep.subr.mxu0 0.0
    %145 = vmatpush1.msra.mxu0 %v31
    %146 = vmatprep.subr.mxu0 0.0
    %147 = vmatpush1.msra.mxu0 %v30
    %148 = vmatprep.subr.mxu0 0.0
    %149 = vmatpush2.msra.mxu0 %v61
    %150 = vmatprep.subr.mxu0 0.0
    %151 = vmatpush2.msra.mxu0 %v60
    %152 = vmatprep.subr.mxu0 0.0
    %153 = vmatpush2.msra.mxu0 %v59
    %154 = vmatprep.subr.mxu0 0.0
    %155 = vmatpush2.msra.mxu0 %v58
    %156 = vmatprep.subr.mxu0 0.0
    %157 = vmatpush2.msra.mxu0 %v57
    %158 = vmatprep.subr.mxu0 0.0
    %159 = vmatpush2.msra.mxu0 %v56
    %160 = vmatprep.subr.mxu0 0.0
    %161 = vmatpush2.msra.mxu0 %v55
    %162 = vmatprep.subr.mxu0 0.0
    %163 = vmatpush2.msra.mxu0 %v54
    %164 = vmatprep.subr.mxu0 0.0
    %165 = vmatpush2.msra.mxu0 %v53
    %166 = vmatprep.subr.mxu0 0.0
    %167 = vmatpush2.msra.mxu0 %v52
    %168 = vmatprep.subr.mxu0 0.0
    %169 = vmatpush2.msra.mxu0 %v51
    %170 = vmatprep.subr.mxu0 0.0
    %171 = vmatpush2.msra.mxu0 %v50
    %172 = vmatprep.subr.mxu0 0.0
    %173 = vmatpush2.msra.mxu0 %v49
    %174 = vmatprep.subr.mxu0 0.0
    %175 = vmatpush2.msra.mxu0 %v48
    %176 = vmatprep.subr.mxu0 0.0
    %177 = vmatpush2.msra.mxu0 %v47
    %178 = vmatprep.subr.mxu0 0.0
    %179 = vmatpush2.msra.mxu0 %v46
    %180 = vmatprep.mubr.f32.mxu0 %v103
    %181 = vmatmul.mubr.f32.gmra.mxu0 %v99
    %v182 = vpop.f32.mrf.mxu0
    %v183 = vadd.f32 %v94, %v182
    %v184 = vpop.f32.mrf.mxu0
    %185 = vdwg.mxu0
    %186 = vmatprep.subr.mxu0 0.0
    %187 = vmatpush1.msra.mxu0 %v77
    %188 = vmatprep.subr.mxu0 0.0
    %189 = vmatpush1.msra.mxu0 %v76
    %190 = vmatprep.subr.mxu0 0.0
    %191 = vmatpush1.msra.mxu0 %v75
    %192 = vmatprep.subr.mxu0 0.0
    %193 = vmatpush1.msra.mxu0 %v74
    %194 = vmatprep.subr.mxu0 0.0
    %195 = vmatpush1.msra.mxu0 %v73
    %196 = vmatprep.subr.mxu0 0.0
    %197 = vmatpush1.msra.mxu0 %v72
    %198 = vmatprep.subr.mxu0 0.0
    %199 = vmatpush1.msra.mxu0 %v71
    %200 = vmatprep.subr.mxu0 0.0
    %201 = vmatpush1.msra.mxu0 %v70
    %202 = vmatprep.subr.mxu0 0.0
    %203 = vmatpush1.msra.mxu0 %v69
    %204 = vmatprep.subr.mxu0 0.0
    %205 = vmatpush1.msra.mxu0 %v68
    %206 = vmatprep.subr.mxu0 0.0
    %207 = vmatpush1.msra.mxu0 %v67
    %208 = vmatprep.subr.mxu0 0.0
    %209 = vmatpush1.msra.mxu0 %v66
    %210 = vmatprep.subr.mxu0 0.0
    %211 = vmatpush1.msra.mxu0 %v65
    %212 = vmatprep.subr.mxu0 0.0
    %213 = vmatpush1.msra.mxu0 %v64
    %214 = vmatprep.subr.mxu0 0.0
    %215 = vmatpush1.msra.mxu0 %v63
    %216 = vmatprep.subr.mxu0 0.0
    %217 = vmatpush1.msra.mxu0 %v62
    %218 = vmatprep.subr.mxu0 0.0
    %219 = vmatpush2.msra.mxu0 %v93
    %220 = vmatprep.subr.mxu0 0.0
    %221 = vmatpush2.msra.mxu0 %v92
    %222 = vmatprep.subr.mxu0 0.0
    %223 = vmatpush2.msra.mxu0 %v91
    %224 = vmatprep.subr.mxu0 0.0
    %225 = vmatpush2.msra.mxu0 %v90
    %226 = vmatprep.subr.mxu0 0.0
    %227 = vmatpush2.msra.mxu0 %v89
    %228 = vmatprep.subr.mxu0 0.0
    %229 = vmatpush2.msra.mxu0 %v88
    %230 = vmatprep.subr.mxu0 0.0
    %231 = vmatpush2.msra.mxu0 %v87
    %232 = vmatprep.subr.mxu0 0.0
    %233 = vmatpush2.msra.mxu0 %v86
    %234 = vmatprep.subr.mxu0 0.0
    %235 = vmatpush2.msra.mxu0 %v85
    %236 = vmatprep.subr.mxu0 0.0
    %237 = vmatpush2.msra.mxu0 %v84
    %238 = vmatprep.subr.mxu0 0.0
    %239 = vmatpush2.msra.mxu0 %v83
    %240 = vmatprep.subr.mxu0 0.0
    %241 = vmatpush2.msra.mxu0 %v82
    %242 = vmatprep.subr.mxu0 0.0
    %243 = vmatpush2.msra.mxu0 %v81
    %244 = vmatprep.subr.mxu0 0.0
    %245 = vmatpush2.msra.mxu0 %v80
    %246 = vmatprep.subr.mxu0 0.0
    %247 = vmatpush2.msra.mxu0 %v79
    %248 = vmatprep.subr.mxu0 0.0
    %249 = vmatpush2.msra.mxu0 %v78
    %250 = vmatprep.mubr.f32.mxu0 %v111
    %251 = vmatmul.mubr.f32.gmra.mxu0 %v107
    %v252 = vpop.f32.mrf.mxu0
    %v253 = vadd.f32 %v183, %v252
    %v254 = vpop.f32.mrf.mxu0
    %255 = vdwg.mxu0
    %vm256 = vcmp.gt.f32.partialorder %v253, 1.0
    %v257 = vsel %vm256, %v253, 0.0
    %258 = vst [vmem:[#allocation5] sm:$0x1] %v257
    // Predicated region
    $region18: #{linear_gate.1} parent=1 // pred_check
      _
    $region19: #{linear_gate.1} parent=1 // pred_check_branch
      %260 = sbr.rel (0) target = $region21
    $region20: #{linear_gate.1} parent=1 // pred_region
      %s262 = ssub.s32 16, 16
      %263 = vsyncadd [#allocation4], %s262
      %s265 = sshll.u32 [#allocation5], 4
      %s266 = int_to_ptr.vmem [resolvable:$true] %s265
      %268 = dma.vmem_to_hbm [thread:$0]  %s266, 16, %s3, [#allocation4]
    $region21: #{linear_gate.1} parent=1 // pred_fallthru
      _
    // Predicated region
    $region22: #{linear_gate.1} parent=1 // pred_check
      _
    $region23: #{linear_gate.1} parent=1 // pred_check_branch
      %270 = sbr.rel (0) target = $region25
    $region24: #{linear_gate.1} parent=1 // pred_region
      %271 = dma.done [#allocation4], 16
    $region25: #{linear_gate.1} parent=1 // pred_fallthru
      _
    %272 = vsyncpa [#allocation3], 1
    %273 = vsyncpa [#allocation4], 1

</llo_original>
